<compile_context>
chip_gen: v7x
topology: tpu7x:2x2x1
jax: 0.10.0
libtpu: 0.0.40
codegen_flags: <defaults>
</compile_context>

<pallas_src>
import functools
import math

import jax
import jax.numpy as jnp
from jax.experimental import pallas as pl
from jax.experimental.pallas import tpu as pltpu


# ----------------------------- config helpers --------------------------------

def _default_vmem_limit():
    # ~96 MiB usable on v5e/v6e (128 MiB physical), ~48 MiB on v7x (64 MiB
    # physical).  Query the chip when possible; fall back to a conservative
    # 48 MiB that is safe on every generation.
    try:
        cap = pltpu.get_tpu_info().vmem_capacity_bytes
        return min(100 * 1024 * 1024, int(cap * 0.75))
    except Exception:
        return 48 * 1024 * 1024


VMEM_LIMIT = _default_vmem_limit()


def _tile_m(M):
    # Biggest M tile that divides M; 512 amortizes per-step overhead and keeps
    # the output store lane/sublane dense.  Full-extent fallback for ragged M.
    for t in (512, 256, 128, 64, 32, 16, 8):
        if M % t == 0:
            return t
    # TODO(synk): pad M / handle remainder tiles instead of a full-extent
    # fallback for large ragged shapes.
    return M


# ----------------------------- Pallas kernels --------------------------------

def linear_kernel(x_ref, w_ref, b_ref, o_ref, *, activation):
    # o = act(x @ w + b).  Weight is VMEM-resident (constant index_map), so a
    # single dot per M-tile; f32 accumulation via preferred_element_type.
    h = jnp.dot(x_ref[...], w_ref[...], preferred_element_type=jnp.float32)
    h = h + b_ref[...].astype(jnp.float32)
    if activation == "gelu":
        # TODO(synk): HF BERT uses exact erf-GELU; tanh approximation kept here
        # (f32 math -- v5e has no bf16 EUP path).
        c = 0.7978845608028654  # sqrt(2/pi)
        h = 0.5 * h * (1.0 + jnp.tanh(c * (h + 0.044715 * h * h * h)))
    o_ref[...] = h.astype(o_ref.dtype)


def linear_residual_ln_kernel(x_ref, w_ref, b_ref, r_ref, g_ref, beta_ref,
                              o_ref):
    # o = LayerNorm(x @ w + b + residual) * g + beta   (BERT eps = 1e-12)
    # Output block spans the full hidden dim -> exact per-row stats.
    h = jnp.dot(x_ref[...], w_ref[...], preferred_element_type=jnp.float32)
    h = h + b_ref[...].astype(jnp.float32) + r_ref[...].astype(jnp.float32)
    mu = jnp.mean(h, axis=-1, keepdims=True)
    var = jnp.mean((h - mu) ** 2, axis=-1, keepdims=True)
    y = (h - mu) * jax.lax.rsqrt(var + 1e-12)
    o_ref[...] = (y * g_ref[...].astype(jnp.float32)
                  + beta_ref[...].astype(jnp.float32)).astype(o_ref.dtype)


def emb_layernorm_kernel(we_ref, te_ref, pe_ref, g_ref, b_ref, o_ref):
    # o = LayerNorm(word + type + pos) * g + b   (embedding path, bf16 in/out,
    # f32 stats; the three-way add is fused so there is no separate XLA pass).
    x = (we_ref[...].astype(jnp.float32) + te_ref[...].astype(jnp.float32)
         + pe_ref[...].astype(jnp.float32))
    mu = jnp.mean(x, axis=-1, keepdims=True)
    var = jnp.mean((x - mu) ** 2, axis=-1, keepdims=True)
    y = (x - mu) * jax.lax.rsqrt(var + 1e-12)
    o_ref[...] = (y * g_ref[...] + b_ref[...]).astype(o_ref.dtype)


def attn_kernel(q_ref, k_ref, v_ref, mb_ref, o_ref, *, scale):
    # One (batch, head) pair per grid step.
    #   q_ref: [1,1,S,dh] bf16      k_ref: [1,1,dh,S] bf16 (K pre-transposed,
    #   v_ref: [1,1,S,dh] bf16              so no in-kernel XLU transpose)
    #   mb_ref: [1,1,S] f32 additive mask bias
    #   o_ref: [1,1,S,dh]
    # All blocks are full-extent in their minor dims -> aligned, unmasked
    # loads/stores; head merge back to [B,S,H] is XLA layout plumbing outside.
    # TODO(synk): for long sequences (S >= 1-2K) switch to an online-softmax
    # (flash) loop over K/V tiles instead of materializing the [S,S] scores.
    q = q_ref[0, 0] * scale                                   # bf16 [S, dh]
    k = k_ref[0, 0]                                           # bf16 [dh, S]
    v = v_ref[0, 0]                                           # bf16 [S, dh]
    s = jnp.dot(q, k, preferred_element_type=jnp.float32)     # f32 [S, S]
    s = s + mb_ref[0].astype(jnp.float32)                     # broadcast [1,S]
    m = jnp.max(s, axis=-1, keepdims=True)
    p = jnp.exp(s - m)
    denom = jnp.sum(p, axis=-1, keepdims=True)
    p = p * pl.reciprocal(denom, approx=True)
    ctx = jnp.dot(p.astype(v.dtype), v,
                  preferred_element_type=jnp.float32)         # f32 [S, dh]
    o_ref[0, 0] = ctx.astype(o_ref.dtype)


# ----------------------------- Pallas wrappers --------------------------------

def pallas_linear(x, w, b, activation=None, out_dtype=jnp.bfloat16):
    # Weight-stationary: grid over M only; w/b get constant index maps.
    M, K = x.shape
    _, N = w.shape
    tm = _tile_m(M)
    kernel = functools.partial(linear_kernel, activation=activation)
    return pl.pallas_call(
        kernel,
        out_shape=jax.ShapeDtypeStruct((M, N), out_dtype),
        grid=(M // tm,),
        in_specs=[
            pl.BlockSpec((tm, K), lambda i: (i, 0)),
            pl.BlockSpec((K, N), lambda i: (0, 0)),   # VMEM-resident weight
            pl.BlockSpec((1, N), lambda i: (0, 0)),
        ],
        out_specs=pl.BlockSpec((tm, N), lambda i: (i, 0)),
        compiler_params=pltpu.CompilerParams(
            dimension_semantics=("parallel",),
            vmem_limit_bytes=VMEM_LIMIT),
    )(x, w, b.reshape(1, N))


def pallas_linear_residual_ln(x, w, b, residual, gamma, beta,
                              out_dtype=jnp.bfloat16):
    M, K = x.shape
    _, H = w.shape
    tm = _tile_m(M)
    return pl.pallas_call(
        linear_residual_ln_kernel,
        out_shape=jax.ShapeDtypeStruct((M, H), out_dtype),
        grid=(M // tm,),
        in_specs=[
            pl.BlockSpec((tm, K), lambda i: (i, 0)),
            pl.BlockSpec((K, H), lambda i: (0, 0)),   # VMEM-resident weight
            pl.BlockSpec((1, H), lambda i: (0, 0)),
            pl.BlockSpec((tm, H), lambda i: (i, 0)),  # residual
            pl.BlockSpec((1, H), lambda i: (0, 0)),
            pl.BlockSpec((1, H), lambda i: (0, 0)),
        ],
        out_specs=pl.BlockSpec((tm, H), lambda i: (i, 0)),
        compiler_params=pltpu.CompilerParams(
            dimension_semantics=("parallel",),
            vmem_limit_bytes=VMEM_LIMIT),
    )(x, w, b.reshape(1, H), residual, gamma.reshape(1, H), beta.reshape(1, H))


def pallas_emb_layernorm(we, te, pe, gamma, beta, out_dtype=jnp.bfloat16):
    M, H = we.shape
    tm = _tile_m(M)
    return pl.pallas_call(
        emb_layernorm_kernel,
        out_shape=jax.ShapeDtypeStruct((M, H), out_dtype),
        grid=(M // tm,),
        in_specs=[
            pl.BlockSpec((tm, H), lambda i: (i, 0)),
            pl.BlockSpec((tm, H), lambda i: (i, 0)),
            pl.BlockSpec((tm, H), lambda i: (i, 0)),
            pl.BlockSpec((1, H), lambda i: (0, 0)),
            pl.BlockSpec((1, H), lambda i: (0, 0)),
        ],
        out_specs=pl.BlockSpec((tm, H), lambda i: (i, 0)),
        compiler_params=pltpu.CompilerParams(
            dimension_semantics=("parallel",),
            vmem_limit_bytes=VMEM_LIMIT),
    )(we, te, pe, gamma.reshape(1, H), beta.reshape(1, H))


def pallas_attention(q, k_t, v, mask_bias, scale):
    # q, v: [B, nH, S, dh] bf16;  k_t: [B, nH, dh, S] bf16;
    # mask_bias: [B, 1, S] f32.  Grid over (batch, head) -> both v7x
    # TensorCores get parallel work and blocks stay small under 64 MiB VMEM.
    B, nH, S, dh = q.shape
    kernel = functools.partial(attn_kernel, scale=scale)
    return pl.pallas_call(
        kernel,
        out_shape=jax.ShapeDtypeStruct((B, nH, S, dh), q.dtype),
        grid=(B, nH),
        in_specs=[
            pl.BlockSpec((1, 1, S, dh), lambda b, h: (b, h, 0, 0)),
            pl.BlockSpec((1, 1, dh, S), lambda b, h: (b, h, 0, 0)),
            pl.BlockSpec((1, 1, S, dh), lambda b, h: (b, h, 0, 0)),
            pl.BlockSpec((1, 1, S), lambda b, h: (b, 0, 0)),
        ],
        out_specs=pl.BlockSpec((1, 1, S, dh), lambda b, h: (b, h, 0, 0)),
        compiler_params=pltpu.CompilerParams(
            dimension_semantics=("parallel", "parallel"),
            vmem_limit_bytes=VMEM_LIMIT),
    )(q, k_t, v, mask_bias)


# ------------------------------- model glue -----------------------------------

def _init(key, shape, scale=0.02):
    return scale * jax.random.normal(key, shape, dtype=jnp.float32)


def init_params(key, cfg):
    H, I = cfg["hidden"], cfg["intermediate"]
    keys = iter(jax.random.split(key, 4 + 4 * cfg["layers"]))
    params = {
        "word_emb": _init(next(keys), (cfg["vocab"], H)),
        "pos_emb": _init(next(keys), (cfg["max_pos"], H)),
        "type_emb": _init(next(keys), (cfg["type_vocab"], H)),
        "emb_ln_g": jnp.ones((H,), jnp.float32),
        "emb_ln_b": jnp.zeros((H,), jnp.float32),
        # tiny classifier stays f32 and is executed as a plain jnp.dot
        "fc_w": _init(next(keys), (H, cfg["num_labels"])),
        "fc_b": jnp.zeros((cfg["num_labels"],), jnp.float32),
        "layers": [],
    }
    for _ in range(cfg["layers"]):
        lp = {
            # fused Q|K|V projection, bf16 weights for the MXU fast path
            "qkv_w": _init(next(keys), (H, 3 * H)).astype(jnp.bfloat16),
            "qkv_b": jnp.zeros((3 * H,), jnp.float32),
            "o_w": _init(next(keys), (H, H)).astype(jnp.bfloat16),
            "o_b": jnp.zeros((H,), jnp.float32),
            "ln1_g": jnp.ones((H,), jnp.float32),
            "ln1_b": jnp.zeros((H,), jnp.float32),
            "i_w": _init(next(keys), (H, I)).astype(jnp.bfloat16),
            "i_b": jnp.zeros((I,), jnp.float32),
            "f_w": _init(next(keys), (I, H)).astype(jnp.bfloat16),
            "f_b": jnp.zeros((H,), jnp.float32),
            "ln2_g": jnp.ones((H,), jnp.float32),
            "ln2_b": jnp.zeros((H,), jnp.float32),
        }
        params["layers"].append(lp)
    return params


def bert_layer(x, lp, mask_bias, B, S, nH, dh):
    H = nH * dh
    # fused QKV projection: [B*S, 3H] bf16
    qkv = pallas_linear(x, lp["qkv_w"], lp["qkv_b"])
    qkv = qkv.reshape(B, S, 3, nH, dh)
    # one XLA layout pass so each head's [S, dh] is a native full-extent block;
    # K is emitted already transposed ([dh, S]) so the kernel never transposes.
    q = jnp.transpose(qkv[:, :, 0], (0, 2, 1, 3))     # [B, nH, S, dh]
    k_t = jnp.transpose(qkv[:, :, 1], (0, 2, 3, 1))   # [B, nH, dh, S]
    v = jnp.transpose(qkv[:, :, 2], (0, 2, 1, 3))     # [B, nH, S, dh]
    ctx = pallas_attention(q, k_t, v, mask_bias, 1.0 / math.sqrt(dh))
    ctx = jnp.transpose(ctx, (0, 2, 1, 3)).reshape(B * S, H)
    # attention output projection with fused residual-add + LayerNorm
    x = pallas_linear_residual_ln(ctx, lp["o_w"], lp["o_b"], x,
                                  lp["ln1_g"], lp["ln1_b"])
    # FFN: up-proj + GELU, then down-proj with fused residual-add + LayerNorm
    h = pallas_linear(x, lp["i_w"], lp["i_b"], activation="gelu")
    x = pallas_linear_residual_ln(h, lp["f_w"], lp["f_b"], x,
                                  lp["ln2_g"], lp["ln2_b"])
    return x


def eae_model_forward(params, cfg, input_ids, token_type_ids, input_mask,
                      mask_pos=None):
    B, S = input_ids.shape
    H, nH = cfg["hidden"], cfg["num_heads"]
    dh = H // nH

    # --- embeddings (gathers in plain JAX, cast to bf16, fused add+LN kernel)
    we = params["word_emb"][input_ids].astype(jnp.bfloat16)          # [B,S,H]
    te = params["type_emb"][token_type_ids].astype(jnp.bfloat16)     # [B,S,H]
    pe = jnp.broadcast_to(params["pos_emb"][:S], (B, S, H)
                          ).astype(jnp.bfloat16)                     # [B,S,H]
    x = pallas_emb_layernorm(we.reshape(B * S, H), te.reshape(B * S, H),
                             pe.reshape(B * S, H),
                             params["emb_ln_g"], params["emb_ln_b"])  # bf16

    # additive attention-mask bias, HF style: (1 - mask) * -10000
    mask_bias = ((1.0 - input_mask.astype(jnp.float32)) * -10000.0
                 ).reshape(B, 1, S)

    for lp in params["layers"]:
        x = bert_layer(x, lp, mask_bias, B, S, nH, dh)

    last_hidden = x.reshape(B, S, H)

    # --- pooled = hidden state at mask position (gather in plain JAX glue) ---
    if mask_pos is not None:
        pooled = last_hidden[jnp.arange(B), mask_pos]        # [B, H]
    else:
        pooled = last_hidden[:, cfg["mask_id"]]              # [B, H]

    # nn.Dropout(0.5) in eval mode == identity.
    # Tiny classifier head (M=B) as a plain XLA dot -- a pallas_call at this
    # shape is pure fixed overhead.
    logits = jnp.dot(pooled.astype(jnp.float32), params["fc_w"],
                     preferred_element_type=jnp.float32) + params["fc_b"]
    return logits


# ---------------------------------- main ---------------------------------------

if __name__ == "__main__":
    cfg = dict(vocab=100, hidden=32, num_heads=4, intermediate=64, layers=2,
               max_pos=16, type_vocab=2, num_labels=5, mask_id=1)

    key = jax.random.PRNGKey(0)
    k_params, k_ids, k_pos = jax.random.split(key, 3)
    params = init_params(k_params, cfg)

    B, S = 2, 8
    input_ids = jax.random.randint(k_ids, (B, S), 0, cfg["vocab"],
                                   dtype=jnp.int32)
    token_type_ids = jnp.zeros((B, S), jnp.int32).at[:, S // 2:].set(1)
    input_mask = jnp.ones((B, S), jnp.int32).at[1, S - 2:].set(0)  # pad row 1
    mask_pos = jax.random.randint(k_pos, (B,), 0, S - 2, dtype=jnp.int32)

    # mask_pos-provided path
    out1 = eae_model_forward(params, cfg, input_ids, token_type_ids, input_mask,
                             mask_pos=mask_pos)
    # mask_pos=None path (uses cfg["mask_id"] as a sequence position, like PyTorch)
    out2 = eae_model_forward(params, cfg, input_ids, token_type_ids, input_mask,
                             mask_pos=None)

    jax.block_until_ready((out1, out2))
    assert out1.shape == (B, cfg["num_labels"])
    assert out2.shape == (B, cfg["num_labels"])
    assert bool(jnp.all(jnp.isfinite(out1))) and bool(jnp.all(jnp.isfinite(out2)))
    print("KERNEL_OK")
</pallas_src>

<mosaic_0001>
module attributes {stable_mosaic.version = 11 : i64} {
  func.func @emb_layernorm_kernel(%arg0: i32, %arg1: memref<16x32xbf16, #tpu.memory_space<vmem>>, %arg2: memref<16x32xbf16, #tpu.memory_space<vmem>>, %arg3: memref<16x32xbf16, #tpu.memory_space<vmem>>, %arg4: memref<1x32xf32, #tpu.memory_space<vmem>>, %arg5: memref<1x32xf32, #tpu.memory_space<vmem>>, %arg6: memref<16x32xbf16, #tpu.memory_space<vmem>>) attributes {dimension_semantics = [#tpu.dimension_semantics<parallel>], iteration_bounds = array<i64: 1>, scalar_prefetch = 0 : i64, scratch_operands = 0 : i64, tpu.core_type = #tpu.core_type<tc>, window_params = [{transform_indices = @transform_0, window_bounds = array<i64: 16, 32>}, {transform_indices = @transform_1, window_bounds = array<i64: 16, 32>}, {transform_indices = @transform_2, window_bounds = array<i64: 16, 32>}, {pipeline_mode = #tpu.pipeline_mode<synchronous>, transform_indices = @transform_3, window_bounds = array<i64: 1, 32>}, {pipeline_mode = #tpu.pipeline_mode<synchronous>, transform_indices = @transform_4, window_bounds = array<i64: 1, 32>}, {transform_indices = @transform_5, window_bounds = array<i64: 16, 32>}]} {
    %c0 = arith.constant 0 : index
    %c0_0 = arith.constant 0 : index
    %0 = vector.load %arg1[%c0, %c0_0] : memref<16x32xbf16, #tpu.memory_space<vmem>>, vector<16x32xbf16>
    %1 = arith.extf %0 : vector<16x32xbf16> to vector<16x32xf32>
    %c0_1 = arith.constant 0 : index
    %c0_2 = arith.constant 0 : index
    %2 = vector.load %arg2[%c0_1, %c0_2] : memref<16x32xbf16, #tpu.memory_space<vmem>>, vector<16x32xbf16>
    %3 = arith.extf %2 : vector<16x32xbf16> to vector<16x32xf32>
    %4 = arith.addf %1, %3 : vector<16x32xf32>
    %c0_3 = arith.constant 0 : index
    %c0_4 = arith.constant 0 : index
    %5 = vector.load %arg3[%c0_3, %c0_4] : memref<16x32xbf16, #tpu.memory_space<vmem>>, vector<16x32xbf16>
    %6 = arith.extf %5 : vector<16x32xbf16> to vector<16x32xf32>
    %7 = arith.addf %4, %6 : vector<16x32xf32>
    %cst = arith.constant dense<0.000000e+00> : vector<16xf32>
    %8 = vector.multi_reduction <add>, %7, %cst [1] : vector<16x32xf32> to vector<16xf32>
    %9 = vector.shape_cast %8 : vector<16xf32> to vector<16x1xf32>
    %cst_5 = arith.constant 3.200000e+01 : f32
    %10 = vector.broadcast %cst_5 : f32 to vector<16x1xf32>
    %11 = arith.divf %9, %10 : vector<16x1xf32>
    %12 = vector.broadcast %11 : vector<16x1xf32> to vector<16x32xf32>
    %13 = arith.subf %7, %12 : vector<16x32xf32>
    %14 = arith.mulf %13, %13 : vector<16x32xf32>
    %cst_6 = arith.constant dense<0.000000e+00> : vector<16xf32>
    %15 = vector.multi_reduction <add>, %14, %cst_6 [1] : vector<16x32xf32> to vector<16xf32>
    %16 = vector.shape_cast %15 : vector<16xf32> to vector<16x1xf32>
    %cst_7 = arith.constant 3.200000e+01 : f32
    %17 = vector.broadcast %cst_7 : f32 to vector<16x1xf32>
    %18 = arith.divf %16, %17 : vector<16x1xf32>
    %19 = vector.broadcast %11 : vector<16x1xf32> to vector<16x32xf32>
    %20 = arith.subf %7, %19 : vector<16x32xf32>
    %cst_8 = arith.constant 9.99999996E-13 : f32
    %21 = vector.broadcast %cst_8 : f32 to vector<16x1xf32>
    %22 = arith.addf %18, %21 : vector<16x1xf32>
    %23 = math.rsqrt %22 : vector<16x1xf32>
    %24 = vector.broadcast %23 : vector<16x1xf32> to vector<16x32xf32>
    %25 = arith.mulf %20, %24 : vector<16x32xf32>
    %c0_9 = arith.constant 0 : index
    %c0_10 = arith.constant 0 : index
    %26 = vector.load %arg4[%c0_9, %c0_10] : memref<1x32xf32, #tpu.memory_space<vmem>>, vector<1x32xf32>
    %27 = vector.broadcast %26 : vector<1x32xf32> to vector<16x32xf32>
    %28 = arith.mulf %25, %27 : vector<16x32xf32>
    %c0_11 = arith.constant 0 : index
    %c0_12 = arith.constant 0 : index
    %29 = vector.load %arg5[%c0_11, %c0_12] : memref<1x32xf32, #tpu.memory_space<vmem>>, vector<1x32xf32>
    %30 = vector.broadcast %29 : vector<1x32xf32> to vector<16x32xf32>
    %31 = arith.addf %28, %30 : vector<16x32xf32>
    %32 = arith.truncf %31 : vector<16x32xf32> to vector<16x32xbf16>
    %c0_13 = arith.constant 0 : index
    %c0_14 = arith.constant 0 : index
    %33 = vector.load %arg6[%c0_13, %c0_14] : memref<16x32xbf16, #tpu.memory_space<vmem>>, vector<16x32xbf16>
    tpu.vector_store %arg6[%c0_13, %c0_14], %32 {strides = array<i32>} : memref<16x32xbf16, #tpu.memory_space<vmem>>, vector<16x32xbf16>,
    return
  }
  func.func @transform_0(%arg0: i32) -> (i32, i32) {
    %c0_i32 = arith.constant 0 : i32
    %c0_i32_0 = arith.constant 0 : i32
    return %arg0, %c0_i32 : i32, i32
  }
  func.func @transform_1(%arg0: i32) -> (i32, i32) {
    %c0_i32 = arith.constant 0 : i32
    %c0_i32_0 = arith.constant 0 : i32
    return %arg0, %c0_i32 : i32, i32
  }
  func.func @transform_2(%arg0: i32) -> (i32, i32) {
    %c0_i32 = arith.constant 0 : i32
    %c0_i32_0 = arith.constant 0 : i32
    return %arg0, %c0_i32 : i32, i32
  }
  func.func @transform_3(%arg0: i32) -> (i32, i32) {
    %c0_i32 = arith.constant 0 : i32
    %c0_i32_0 = arith.constant 0 : i32
    %c0_i32_1 = arith.constant 0 : i32
    return %c0_i32, %c0_i32_0 : i32, i32
  }
  func.func @transform_4(%arg0: i32) -> (i32, i32) {
    %c0_i32 = arith.constant 0 : i32
    %c0_i32_0 = arith.constant 0 : i32
    %c0_i32_1 = arith.constant 0 : i32
    return %c0_i32, %c0_i32_0 : i32, i32
  }
  func.func @transform_5(%arg0: i32) -> (i32, i32) {
    %c0_i32 = arith.constant 0 : i32
    %c0_i32_0 = arith.constant 0 : i32
    return %arg0, %c0_i32 : i32, i32
  }
}

</mosaic_0001>

<llo_original>
// kernel: tpu_custom_call.1
$region0: #{tpu_custom_call.1}
  #allocation0 [shape = 'u32[]', space=smem, size = 0x4, offset = 0x4, fixed_abs, tag = 'smem constant byte address 0x4 - core index']
  #allocation1 [shape = 'u32[144,128]{1,0:T(1,128)}', space=vmem, size = 0x12000, scoped, tag = 'internal scratch']
  %s0 = inlined_call_operand.hbm [shape: bf16[16,32], index: 0, kind: input, shape index: {}]
  %s1 = inlined_call_operand.hbm [shape: bf16[16,32], index: 1, kind: input, shape index: {}]
  %s2 = inlined_call_operand.hbm [shape: bf16[16,32], index: 2, kind: input, shape index: {}]
  %s3 = inlined_call_operand.vmem [shape: f32[1,32], index: 3, kind: input, shape index: {}]
  %s4 = inlined_call_operand.vmem [shape: f32[1,32], index: 4, kind: input, shape index: {}]
  %s5 = inlined_call_operand.hbm [shape: bf16[16,32], index: 5, kind: output, shape index: {}]
  %s6 = sld [smem:[#allocation0]]
  $region42: #{tpu_custom_call.1} parent=0
    _
  %s8 = ssub.s32 1, %s6
  %s9 = scalar_select 0, %s8, %s6
  $region1: #{tpu_custom_call.1} parent=0
    #allocation2 [shape = 'u8[4096]{0}', space=vmem, size = 0x1000, scoped, tag = 'input window, operand 0, single buffered']
    #allocation3 [shape = 's32[1]{0}', space=sflag, size = 0x4, scoped, tag = 'scoped memory for tpu_custom_call.1']
    #allocation4 [shape = 's32[1]{0}', space=sflag, size = 0x4, scoped, tag = 'scoped memory for tpu_custom_call.1']
    #allocation5 [shape = 'u8[4096]{0}', space=vmem, size = 0x1000, scoped, tag = 'input window, operand 1, single buffered']
    #allocation6 [shape = 's32[1]{0}', space=sflag, size = 0x4, scoped, tag = 'scoped memory for tpu_custom_call.1']
    #allocation7 [shape = 'u8[4096]{0}', space=vmem, size = 0x1000, scoped, tag = 'input window, operand 2, single buffered']
    #allocation8 [shape = 'u8[4096]{0}', space=vmem, size = 0x1000, scoped, tag = 'output window, operand 0, single buffered']
    %10 = vsyncpa [#allocation3], 0
    %11 = vsyncpa [#allocation6], 0
    %12 = vsyncpa [#allocation4], 0
    // Predicated region
    $region2: #{tpu_custom_call.1} parent=1 // pred_check
      _
    $region3: #{tpu_custom_call.1} parent=1 // pred_check_branch
      %14 = sbr.rel (0) target = $region5
    $region4: #{tpu_custom_call.1} parent=1 // pred_region
      %s16 = ssub.s32 128, 128
      %17 = vsyncadd [#allocation3], %s16
      %s18 = sshll.u32 [#allocation2], 4
      %s19 = int_to_ptr.vmem [resolvable:$true] %s18
      %24 = dma.hbm_to_vmem [thread:$0]  %s0, 128, %s19, [#allocation3], 64, 64, 4
    $region5: #{tpu_custom_call.1} parent=1 // pred_fallthru
      _
    // Predicated region
    $region6: #{tpu_custom_call.1} parent=1 // pred_check
      _
    $region7: #{tpu_custom_call.1} parent=1 // pred_check_branch
      %26 = sbr.rel (0) target = $region9
    $region8: #{tpu_custom_call.1} parent=1 // pred_region
      %s28 = ssub.s32 128, 128
      %29 = vsyncadd [#allocation6], %s28
      %s30 = sshll.u32 [#allocation5], 4
      %s31 = int_to_ptr.vmem [resolvable:$true] %s30
      %36 = dma.hbm_to_vmem [thread:$0]  %s1, 128, %s31, [#allocation6], 64, 64, 4
    $region9: #{tpu_custom_call.1} parent=1 // pred_fallthru
      _
    // Predicated region
    $region10: #{tpu_custom_call.1} parent=1 // pred_check
      _
    $region11: #{tpu_custom_call.1} parent=1 // pred_check_branch
      %38 = sbr.rel (0) target = $region13
    $region12: #{tpu_custom_call.1} parent=1 // pred_region
      %s40 = ssub.s32 128, 128
      %41 = vsyncadd [#allocation6], %s40
      %s42 = sshll.u32 [#allocation7], 4
      %s43 = int_to_ptr.vmem [resolvable:$true] %s42
      %48 = dma.hbm_to_vmem [thread:$0]  %s2, 128, %s43, [#allocation6], 64, 64, 4
    $region13: #{tpu_custom_call.1} parent=1 // pred_fallthru
      _
    // Predicated region
    $region14: #{tpu_custom_call.1} parent=1 // pred_check
      _
    $region15: #{tpu_custom_call.1} parent=1 // pred_check_branch
      %50 = sbr.rel (0) target = $region17
    $region16: #{tpu_custom_call.1} parent=1 // pred_region
      _
    $region17: #{tpu_custom_call.1} parent=1 // pred_fallthru
      _
    // Predicated region
    $region18: #{tpu_custom_call.1} parent=1 // pred_check
      _
    $region19: #{tpu_custom_call.1} parent=1 // pred_check_branch
      %52 = sbr.rel (0) target = $region21
    $region20: #{tpu_custom_call.1} parent=1 // pred_region
      _
    $region21: #{tpu_custom_call.1} parent=1 // pred_fallthru
      _
    // Predicated region
    $region22: #{tpu_custom_call.1} parent=1 // pred_check
      _
    $region23: #{tpu_custom_call.1} parent=1 // pred_check_branch
      %54 = sbr.rel (0) target = $region25
    $region24: #{tpu_custom_call.1} parent=1 // pred_region
      %55 = dma.done [#allocation3], 128
    $region25: #{tpu_custom_call.1} parent=1 // pred_fallthru
      _
    // Predicated region
    $region26: #{tpu_custom_call.1} parent=1 // pred_check
      _
    $region27: #{tpu_custom_call.1} parent=1 // pred_check_branch
      %57 = sbr.rel (0) target = $region29
    $region28: #{tpu_custom_call.1} parent=1 // pred_region
      %58 = dma.done [#allocation6], 128
    $region29: #{tpu_custom_call.1} parent=1 // pred_fallthru
      _
    // Predicated region
    $region30: #{tpu_custom_call.1} parent=1 // pred_check
      _
    $region31: #{tpu_custom_call.1} parent=1 // pred_check_branch
      %60 = sbr.rel (0) target = $region33
    $region32: #{tpu_custom_call.1} parent=1 // pred_region
      %61 = dma.done [#allocation6], 128
    $region33: #{tpu_custom_call.1} parent=1 // pred_fallthru
      _
    %v62 = vld [vmem:[#allocation2] sm:$0xf]
    %v63 = vld [vmem:[#allocation2 + $0x4] sm:$0xf]
    %v64 = vunpack.c.l.bf16 %v62
    %v65 = vunpack.c.l.bf16 %v63
    %v66 = vld [vmem:[#allocation5] sm:$0xf]
    %v67 = vld [vmem:[#allocation5 + $0x4] sm:$0xf]
    %v68 = vunpack.c.l.bf16 %v66
    %v69 = vunpack.c.l.bf16 %v67
    %v70 = vadd.f32 %v64, %v68
    %v71 = vadd.f32 %v65, %v69
    %v72 = vld [vmem:[#allocation7] sm:$0xf]
    %v73 = vld [vmem:[#allocation7 + $0x4] sm:$0xf]
    %v74 = vunpack.c.l.bf16 %v72
    %v75 = vunpack.c.l.bf16 %v73
    %v76 = vadd.f32 %v70, %v74
    %v77 = vadd.f32 %v71, %v75
    %vm78 = vcmask 261120
    %v79 = vsel %vm78, %v76, 0.0
    %80 = vadd.xlane.f32.xlu0 %v79
    %v81 = vpop.xlane.xlu0 %80
    %v82 = vsel %vm78, %v77, 0.0
    %83 = vadd.xlane.f32.xlu0 %v82
    %v84 = vpop.xlane.xlu0 %83
    %v85 = vrcp.pop 32.0
    %v86 = vmul.f32 %v81, %v85
    %v87 = vmul.f32 %v84, %v85
    %v88 = vsub.f32 %v76, %v86
    %v89 = vsub.f32 %v77, %v87
    %v90 = vmul.f32 %v88, %v88
    %v91 = vmul.f32 %v89, %v89
    %v92 = vsel %vm78, %v90, 0.0
    %93 = vadd.xlane.f32.xlu0 %v92
    %v94 = vpop.xlane.xlu0 %93
    %v95 = vsel %vm78, %v91, 0.0
    %96 = vadd.xlane.f32.xlu0 %v95
    %v97 = vpop.xlane.xlu0 %96
    %v98 = vmul.f32 %v94, %v85
    %v99 = vmul.f32 %v97, %v85
    %v100 = vadd.f32 %v98, 1e-12
    %v101 = vadd.f32 %v99, 1e-12
    %v102 = vrsqrt.pop %v100
    %v103 = vrsqrt.pop %v101
    %v104 = vmul.f32 %v88, %v102
    %v105 = vmul.f32 %v89, %v103
    %v106 = vld [vmem:[%s3] sm:$0x1]
    %v108 = vlaneseq
    %v109 = vshrl.u32 %v108, 7
    %v110 = vsub.s32 0, %v109
    %v111 = vrot.slane %v106, %v110
    %v113 = vmul.f32 %v104, %v111
    %v114 = vmul.f32 %v105, %v111
    %v115 = vld [vmem:[%s4] sm:$0x1]
    %v117 = vlaneseq
    %v118 = vshrl.u32 %v117, 7
    %v119 = vsub.s32 0, %v118
    %v120 = vrot.slane %v115, %v119
    %v122 = vadd.f32 %v113, %v120
    %v123 = vadd.f32 %v114, %v120
    %v124 = vpack.c.bf16 %v123, %v122
    %v126 = vunpack.c.l.b16 %v124
    %v127 = vunpack.c.h.b16 %v124
    %v128 = vpack.c.b16 %v126, %v126
    %v129 = vpack.c.b16 %v127, %v127
    %vm132 = vcmask 257024
    %133 = vst.msk [vmem:[#allocation8] sm:$0xf] %vm132, %v128
    %134 = vst.msk [vmem:[#allocation8 + $0x4] sm:$0xf] %vm132, %v129
    // Predicated region
    $region34: #{tpu_custom_call.1} parent=1 // pred_check
      _
    $region35: #{tpu_custom_call.1} parent=1 // pred_check_branch
      %136 = sbr.rel (0) target = $region37
    $region36: #{tpu_custom_call.1} parent=1 // pred_region
      %s138 = ssub.s32 128, 128
      %139 = vsyncadd [#allocation4], %s138
      %s140 = sshll.u32 [#allocation8], 4
      %s141 = int_to_ptr.vmem [resolvable:$true] %s140
      %146 = dma.vmem_to_hbm [thread:$0]  %s141, 128, %s5, [#allocation4], 64, 64, 4
    $region37: #{tpu_custom_call.1} parent=1 // pred_fallthru
      _
    // Predicated region
    $region38: #{tpu_custom_call.1} parent=1 // pred_check
      _
    $region39: #{tpu_custom_call.1} parent=1 // pred_check_branch
      %148 = sbr.rel (0) target = $region41
    $region40: #{tpu_custom_call.1} parent=1 // pred_region
      %149 = dma.done [#allocation4], 128
    $region41: #{tpu_custom_call.1} parent=1 // pred_fallthru
      _
    %150 = vsyncpa [#allocation3], 1
    %151 = vsyncpa [#allocation6], 1
    %152 = vsyncpa [#allocation4], 1

</llo_original>
